<compile_context>
chip_gen: v7x
topology: tpu7x:2x2x1
jax: 0.10.0
libtpu: 0.0.40
codegen_flags: <defaults>
</compile_context>

<pallas_src>
import functools

import jax
import jax.numpy as jnp
from jax.experimental import pallas as pl
from jax.experimental.pallas import tpu as pltpu

_LANE_CHUNK = 512  # lanes processed per inner-loop step (keeps vreg pressure low)


def _nce_aue_kernel(pred_ref, labels_ref, out_ref, *,
                    a, q, n_total, tile_n, chunk, needs_mask):
    # pred_ref:   (C, tile_n) float  -- classes on sublanes, rows lane-dense
    # labels_ref: (1, tile_n) int32
    # out_ref:    (1, 2, 128) f32    -- per-tile [sum_nce, sum_aue], lane-replicated
    i = pl.program_id(0)
    c = pred_ref.shape[0]
    num_chunks = tile_n // chunk
    inv_q = 1.0 / q
    const_aq = (a - 1.0) ** q

    # Hoisted iotas (reused by every chunk of this tile).
    col_ids = jax.lax.broadcasted_iota(jnp.int32, (1, chunk), 1)
    class_ids = jax.lax.broadcasted_iota(jnp.int32, (c, chunk), 0)
    rows_left_in_tile = n_total - i * tile_n  # traced int32 scalar

    def chunk_body(j, carry):
        s_nce, s_aue = carry
        off = pl.multiple_of(j * chunk, chunk)
        pred = pred_ref[:, pl.ds(off, chunk)].astype(jnp.float32)   # (C, chunk)
        labels = labels_ref[:, pl.ds(off, chunk)]                   # (1, chunk)

        if needs_mask:
            # Column k of this chunk is a real row iff i*tile_n + off + k < N.
            valid = col_ids < (rows_left_in_tile - off)             # (1, chunk)
            pred = jnp.where(valid, pred, 0.0)      # keep padded columns finite

        # One-hot kept as a boolean mask; never materialized as float.
        is_label = class_ids == labels                              # (C, chunk)

        # Numerically stable softmax / log-softmax pieces over the class axis.
        m = jnp.max(pred, axis=0, keepdims=True)                    # (1, chunk)
        shifted = pred - m                                          # (C, chunk)
        exps = jnp.exp(shifted)                                     # (C, chunk) EUP
        sumexp = jnp.sum(exps, axis=0, keepdims=True)               # (1, chunk)
        logsumexp = jnp.log(sumexp)                                 # (1, chunk)
        sum_shifted = jnp.sum(shifted, axis=0, keepdims=True)
        shifted_y = jnp.sum(jnp.where(is_label, shifted, 0.0), axis=0, keepdims=True)
        exps_y = jnp.sum(jnp.where(is_label, exps, 0.0), axis=0, keepdims=True)

        # NCE per row: (-log_softmax[y]) / (-sum_c log_softmax[c]).
        nce_num = logsumexp - shifted_y               # = -log_softmax[y]
        nce_den = c * logsumexp - sum_shifted         # = -sum(log_softmax) > 0
        nce = nce_num * pl.reciprocal(nce_den, approx=True)

        # AUE per row: ((a - p[y])^q - (a-1)^q) / q  with  p[y] = softmax[y].
        p_y = exps_y * pl.reciprocal(sumexp, approx=True)
        t = a - p_y                                   # > 0 since a > 1 >= p_y
        if q == 1.5:
            pow_term = t * jnp.sqrt(t)                # exact for q=1.5, 1 EUP op
        else:
            pow_term = jnp.exp(q * jnp.log(t))
        aue = (pow_term - const_aq) * inv_q           # (1, chunk)

        if needs_mask:
            validf = valid.astype(jnp.float32)
            nce = nce * validf
            aue = aue * validf

        return s_nce + jnp.sum(nce), s_aue + jnp.sum(aue)

    init = (jnp.zeros((), jnp.float32), jnp.zeros((), jnp.float32))
    s_nce, s_aue = jax.lax.fori_loop(0, num_chunks, chunk_body, init)

    # Lane-dense per-tile partial output (scalar replicated across 128 lanes).
    row = jnp.concatenate([jnp.broadcast_to(s_nce, (1, 128)),
                           jnp.broadcast_to(s_aue, (1, 128))], axis=0)  # (2, 128)
    out_ref[...] = row[None]                                            # (1, 2, 128)


def _round_up(x, m):
    return ((x + m - 1) // m) * m


def nce_and_aue(pred, labels, *, alpha=1.0, beta=1.0, a=6.0, q=1.5,
                tile_n=None, class_major=False):
    """NCE + AUE loss: alpha*mean(nce) + beta*mean(aue) -> scalar f32.

    pred: (N, C) float logits -- or (C, N) if class_major=True (skips the extra
    HBM transpose pass).  labels: (N,) integer class ids.
    """
    if class_major:
        c, n = pred.shape
        pred_t = pred
    else:
        n, c = pred.shape
        # TODO(synk): have the producing matmul emit (C, N) directly (swap its
        # operand order / fuse this loss into its epilogue) so this extra
        # full-HBM transpose pass disappears for the bandwidth-bound loss.
        pred_t = pred.T

    if tile_n is None:
        tile_n = min(32768, _round_up(n, _LANE_CHUNK))
    if tile_n % 128 != 0:
        raise ValueError("tile_n must be a multiple of 128")
    chunk = min(_LANE_CHUNK, tile_n)
    if tile_n % chunk != 0:
        raise ValueError(f"tile_n must be a multiple of {chunk}")

    num_tiles = pl.cdiv(n, tile_n)
    needs_mask = (n % tile_n) != 0

    labels_row = labels.reshape(1, n).astype(jnp.int32)

    kernel = functools.partial(
        _nce_aue_kernel, a=float(a), q=float(q), n_total=n,
        tile_n=tile_n, chunk=chunk, needs_mask=needs_mask)

    # Conservative f32-based VMEM estimate (double-buffered pred + labels blocks,
    # sublane padding included).  Only override the scoped limit for big tiles
    # that could exceed v5e's 16 MiB default; the default tile never triggers it.
    est_vmem = 2 * (_round_up(c, 8) * tile_n * 4 + 8 * tile_n * 4) + (1 << 20)
    vmem_limit = None
    if est_vmem > 10 * 1024 * 1024:
        vmem_limit = int(min(est_vmem * 1.5, 128 * 1024 * 1024))

    partials = pl.pallas_call(
        kernel,
        out_shape=jax.ShapeDtypeStruct((num_tiles, 2, 128), jnp.float32),
        grid=(num_tiles,),
        in_specs=[
            pl.BlockSpec((c, tile_n), lambda i: (0, i)),   # pred rows, pipelined
            pl.BlockSpec((1, tile_n), lambda i: (0, i)),   # labels, lane-dense
        ],
        out_specs=pl.BlockSpec((1, 2, 128), lambda i: (i, 0, 0)),
        compiler_params=pltpu.CompilerParams(
            dimension_semantics=("parallel",),             # megacore-friendly
            vmem_limit_bytes=vmem_limit),
    )(pred_t, labels_row)

    # Tiny final reduction in the wrapper (every lane of a partial row is the
    # same value, so reading lane 0 is enough).
    nce_sum = jnp.sum(partials[:, 0, 0])
    aue_sum = jnp.sum(partials[:, 1, 0])
    return (alpha * nce_sum + beta * aue_sum) / n


def _reference(pred, labels, *, alpha=1.0, beta=1.0, a=6.0, q=1.5, num_classes=10):
    # Pure-JAX mirror of the PyTorch NCEandAUE module.
    logp = jax.nn.log_softmax(pred.astype(jnp.float32), axis=1)
    p = jax.nn.softmax(pred.astype(jnp.float32), axis=1)
    onehot = jax.nn.one_hot(labels, num_classes, dtype=jnp.float32)
    nce = (-jnp.sum(onehot * logp, axis=1)) / (-jnp.sum(logp, axis=1))
    aue = (jnp.power(a - jnp.sum(onehot * p, axis=1), q) - (a - 1.0) ** q) / q
    return alpha * jnp.mean(nce) + beta * jnp.mean(aue)


if __name__ == "__main__":
    num_classes = 10
    alpha, beta, a, q = 1.0, 1.0, 6.0, 1.5
    # Approx reciprocals (EUP vrcp) introduce a small (<~1e-3) relative error on
    # the mean-reduced loss, so tolerances are loosened vs exact-divide version.
    rtol, atol = 2e-3, 1e-4

    key = jax.random.PRNGKey(0)
    k1, k2, k3, k4, k5, k6 = jax.random.split(key, 6)

    # Test 1: tiny batch, single ragged tile (tail masking, single chunk).
    batch = 8
    pred = jax.random.normal(k1, (batch, num_classes), dtype=jnp.float32)
    labels = jax.random.randint(k2, (batch,), 0, num_classes, dtype=jnp.int32)
    out = jax.block_until_ready(
        nce_and_aue(pred, labels, alpha=alpha, beta=beta, a=a, q=q))
    ref = _reference(pred, labels, alpha=alpha, beta=beta, a=a, q=q,
                     num_classes=num_classes)
    assert jnp.allclose(out, ref, rtol=rtol, atol=atol), (out, ref)

    # Test 2: several row tiles + ragged tail (260 rows, 128-row tiles).
    batch2 = 260
    pred2 = jax.random.normal(k3, (batch2, num_classes), dtype=jnp.float32)
    labels2 = jax.random.randint(k4, (batch2,), 0, num_classes, dtype=jnp.int32)
    out2 = jax.block_until_ready(
        nce_and_aue(pred2, labels2, alpha=alpha, beta=beta, a=a, q=q, tile_n=128))
    ref2 = _reference(pred2, labels2, alpha=alpha, beta=beta, a=a, q=q,
                      num_classes=num_classes)
    assert jnp.allclose(out2, ref2, rtol=rtol, atol=atol), (out2, ref2)

    # Test 3: exact-multiple batch -> mask-free path, multi-chunk inner loop.
    batch3 = 2048
    pred3 = jax.random.normal(k5, (batch3, num_classes), dtype=jnp.float32)
    labels3 = jax.random.randint(k6, (batch3,), 0, num_classes, dtype=jnp.int32)
    out3 = jax.block_until_ready(
        nce_and_aue(pred3, labels3, alpha=alpha, beta=beta, a=a, q=q, tile_n=1024))
    ref3 = _reference(pred3, labels3, alpha=alpha, beta=beta, a=a, q=q,
                      num_classes=num_classes)
    assert jnp.allclose(out3, ref3, rtol=rtol, atol=atol), (out3, ref3)

    print("KERNEL_OK")
</pallas_src>

<mosaic_0001>
module attributes {stable_mosaic.version = 11 : i64} {
  func.func @_nce_aue_kernel(%arg0: i32, %arg1: memref<10x512xf32, #tpu.memory_space<vmem>>, %arg2: memref<1x512xi32, #tpu.memory_space<vmem>>, %arg3: memref<1x2x128xf32, #tpu.memory_space<vmem>>) attributes {dimension_semantics = [#tpu.dimension_semantics<parallel>], iteration_bounds = array<i64: 1>, scalar_prefetch = 0 : i64, scratch_operands = 0 : i64, tpu.core_type = #tpu.core_type<tc>, window_params = [{transform_indices = @transform_0, window_bounds = array<i64: 10, 512>}, {transform_indices = @transform_1, window_bounds = array<i64: 1, 512>}, {transform_indices = @transform_2, window_bounds = array<i64: 1, 2, 128>}]} {
    %0 = tpu.iota {dimensions = array<i32: 1>} : vector<1x512xi32>
    %1 = tpu.iota {dimensions = array<i32: 0>} : vector<10x512xi32>
    %c512_i32 = arith.constant 512 : i32
    %2 = arith.muli %arg0, %c512_i32 : i32
    %c8_i32 = arith.constant 8 : i32
    %3 = arith.subi %c8_i32, %2 : i32
    %cst = arith.constant 0.000000e+00 : f32
    %cst_0 = arith.constant 0.000000e+00 : f32
    %c0_i32 = arith.constant 0 : i32
    %c512_i32_1 = arith.constant 512 : i32
    %4 = arith.muli %c0_i32, %c512_i32_1 : i32
    %5 = tpu.assume_multiple %4, 512 : i32
    %c0 = arith.constant 0 : index
    %6 = arith.index_cast %5 : i32 to index
    %7 = vector.load %arg1[%c0, %6] : memref<10x512xf32, #tpu.memory_space<vmem>>, vector<10x512xf32>
    %c0_2 = arith.constant 0 : index
    %8 = arith.index_cast %5 : i32 to index
    %9 = vector.load %arg2[%c0_2, %8] : memref<1x512xi32, #tpu.memory_space<vmem>>, vector<1x512xi32>
    %10 = arith.subi %3, %5 : i32
    %11 = vector.broadcast %10 : i32 to vector<1x512xi32>
    %12 = arith.cmpi slt, %0, %11 : vector<1x512xi32>
    %cst_3 = arith.constant 0.000000e+00 : f32
    %13 = vector.shape_cast %12 : vector<1x512xi1> to vector<1x512xi1>
    %14 = vector.broadcast %13 : vector<1x512xi1> to vector<10x512xi1>
    %15 = vector.broadcast %cst_3 : f32 to vector<10x512xf32>
    %16 = arith.select %14, %7, %15 : vector<10x512xi1>, vector<10x512xf32>
    %17 = vector.broadcast %9 : vector<1x512xi32> to vector<10x512xi32>
    %18 = arith.cmpi eq, %1, %17 : vector<10x512xi32>
    %cst_4 = arith.constant dense<0xFF800000> : vector<512xf32>
    %19 = vector.multi_reduction <maximumf>, %16, %cst_4 [0] : vector<10x512xf32> to vector<512xf32>
    %20 = vector.shape_cast %19 : vector<512xf32> to vector<1x512xf32>
    %21 = vector.broadcast %20 : vector<1x512xf32> to vector<10x512xf32>
    %22 = arith.subf %16, %21 : vector<10x512xf32>
    %23 = math.exp %22 : vector<10x512xf32>
    %cst_5 = arith.constant dense<0.000000e+00> : vector<512xf32>
    %24 = vector.multi_reduction <add>, %23, %cst_5 [0] : vector<10x512xf32> to vector<512xf32>
    %25 = vector.shape_cast %24 : vector<512xf32> to vector<1x512xf32>
    %26 = math.log %25 : vector<1x512xf32>
    %cst_6 = arith.constant dense<0.000000e+00> : vector<512xf32>
    %27 = vector.multi_reduction <add>, %22, %cst_6 [0] : vector<10x512xf32> to vector<512xf32>
    %28 = vector.shape_cast %27 : vector<512xf32> to vector<1x512xf32>
    %cst_7 = arith.constant 0.000000e+00 : f32
    %29 = vector.broadcast %cst_7 : f32 to vector<10x512xf32>
    %30 = arith.select %18, %22, %29 : vector<10x512xi1>, vector<10x512xf32>
    %cst_8 = arith.constant dense<0.000000e+00> : vector<512xf32>
    %31 = vector.multi_reduction <add>, %30, %cst_8 [0] : vector<10x512xf32> to vector<512xf32>
    %32 = vector.shape_cast %31 : vector<512xf32> to vector<1x512xf32>
    %cst_9 = arith.constant 0.000000e+00 : f32
    %33 = vector.broadcast %cst_9 : f32 to vector<10x512xf32>
    %34 = arith.select %18, %23, %33 : vector<10x512xi1>, vector<10x512xf32>
    %cst_10 = arith.constant dense<0.000000e+00> : vector<512xf32>
    %35 = vector.multi_reduction <add>, %34, %cst_10 [0] : vector<10x512xf32> to vector<512xf32>
    %36 = vector.shape_cast %35 : vector<512xf32> to vector<1x512xf32>
    %37 = arith.subf %26, %32 : vector<1x512xf32>
    %cst_11 = arith.constant 1.000000e+01 : f32
    %38 = vector.broadcast %cst_11 : f32 to vector<1x512xf32>
    %39 = arith.mulf %38, %26 : vector<1x512xf32>
    %40 = arith.subf %39, %28 : vector<1x512xf32>
    %41 = tpu.reciprocal %40 {approx = true} : vector<1x512xf32> -> vector<1x512xf32>
    %42 = arith.mulf %37, %41 : vector<1x512xf32>
    %43 = tpu.reciprocal %25 {approx = true} : vector<1x512xf32> -> vector<1x512xf32>
    %44 = arith.mulf %36, %43 : vector<1x512xf32>
    %cst_12 = arith.constant 6.000000e+00 : f32
    %45 = vector.broadcast %cst_12 : f32 to vector<1x512xf32>
    %46 = arith.subf %45, %44 : vector<1x512xf32>
    %47 = math.sqrt %46 : vector<1x512xf32>
    %48 = arith.mulf %46, %47 : vector<1x512xf32>
    %cst_13 = arith.constant 11.1803398 : f32
    %49 = vector.broadcast %cst_13 : f32 to vector<1x512xf32>
    %50 = arith.subf %48, %49 : vector<1x512xf32>
    %cst_14 = arith.constant 0.666666686 : f32
    %51 = vector.broadcast %cst_14 : f32 to vector<1x512xf32>
    %52 = arith.mulf %50, %51 : vector<1x512xf32>
    %53 = arith.extui %12 : vector<1x512xi1> to vector<1x512xi32>
    %54 = arith.sitofp %53 : vector<1x512xi32> to vector<1x512xf32>
    %55 = arith.mulf %42, %54 : vector<1x512xf32>
    %56 = arith.mulf %52, %54 : vector<1x512xf32>
    %57 = vector.shape_cast %55 : vector<1x512xf32> to vector<1x1x512xf32>
    %cst_15 = arith.constant dense<0.000000e+00> : vector<1xf32>
    %58 = vector.multi_reduction <add>, %57, %cst_15 [1, 2] : vector<1x1x512xf32> to vector<1xf32>
    %59 = vector.shape_cast %58 : vector<1xf32> to vector<1x1x1xf32>
    %60 = vector.extract %59[0, 0, 0] : f32 from vector<1x1x1xf32>
    %61 = arith.addf %cst, %60 : f32
    %62 = vector.shape_cast %56 : vector<1x512xf32> to vector<1x1x512xf32>
    %cst_16 = arith.constant dense<0.000000e+00> : vector<1xf32>
    %63 = vector.multi_reduction <add>, %62, %cst_16 [1, 2] : vector<1x1x512xf32> to vector<1xf32>
    %64 = vector.shape_cast %63 : vector<1xf32> to vector<1x1x1xf32>
    %65 = vector.extract %64[0, 0, 0] : f32 from vector<1x1x1xf32>
    %66 = arith.addf %cst_0, %65 : f32
    %c1_i32 = arith.constant 1 : i32
    %67 = vector.broadcast %61 : f32 to vector<1x128xf32>
    %68 = vector.broadcast %66 : f32 to vector<1x128xf32>
    %69 = tpu.concatenate %67, %68 in 0 : vector<1x128xf32>, vector<1x128xf32> -> vector<2x128xf32>
    %70 = vector.shape_cast %69 : vector<2x128xf32> to vector<1x2x128xf32>
    %c0_17 = arith.constant 0 : index
    %c0_18 = arith.constant 0 : index
    %c0_19 = arith.constant 0 : index
    %71 = vector.load %arg3[%c0_17, %c0_18, %c0_19] : memref<1x2x128xf32, #tpu.memory_space<vmem>>, vector<1x2x128xf32>
    tpu.vector_store %arg3[%c0_17, %c0_18, %c0_19], %70 {strides = array<i32>} : memref<1x2x128xf32, #tpu.memory_space<vmem>>, vector<1x2x128xf32>,
    return
  }
  func.func @transform_0(%arg0: i32) -> (i32, i32) {
    %c0_i32 = arith.constant 0 : i32
    %c0_i32_0 = arith.constant 0 : i32
    return %c0_i32, %arg0 : i32, i32
  }
  func.func @transform_1(%arg0: i32) -> (i32, i32) {
    %c0_i32 = arith.constant 0 : i32
    %c0_i32_0 = arith.constant 0 : i32
    return %c0_i32, %arg0 : i32, i32
  }
  func.func @transform_2(%arg0: i32) -> (i32, i32, i32) {
    %c0_i32 = arith.constant 0 : i32
    %c0_i32_0 = arith.constant 0 : i32
    %c0_i32_1 = arith.constant 0 : i32
    return %arg0, %c0_i32, %c0_i32_0 : i32, i32, i32
  }
}

</mosaic_0001>

<llo_original>
// kernel: tpu_custom_call.1
$region0: #{tpu_custom_call.1}
  #allocation0 [shape = 'u32[]', space=smem, size = 0x4, offset = 0x4, fixed_abs, tag = 'smem constant byte address 0x4 - core index']
  #allocation1 [shape = 'u32[144,128]{1,0:T(1,128)}', space=vmem, size = 0x12000, scoped, tag = 'internal scratch']
  %s0 = inlined_call_operand.vmem [shape: f32[10,8], index: 0, kind: input, shape index: {}]
  %s1 = inlined_call_operand.vmem [shape: s32[1,8], index: 1, kind: input, shape index: {}]
  %s2 = inlined_call_operand.hbm [shape: f32[1,2,128], index: 2, kind: output, shape index: {}]
  %s3 = sld [smem:[#allocation0]]
  $region56: #{tpu_custom_call.1} parent=0
    _
  %s5 = ssub.s32 1, %s3
  %s6 = scalar_select 0, %s5, %s3
  $region1: #{tpu_custom_call.1} parent=0
    #allocation2 [shape = 'u8[32768]{0}', space=vmem, size = 0x8000, scoped, tag = 'input window, operand 0, single buffered']
    #allocation3 [shape = 'u8[1024]{0}', space=vmem, size = 0x400, scoped, tag = 'output window, operand 0, single buffered']
    #allocation4 [shape = 's32[1]{0}', space=sflag, size = 0x4, scoped, tag = 'scoped memory for tpu_custom_call.1']
    %7 = vsyncpa [#allocation4], 0
    // Predicated region
    $region2: #{tpu_custom_call.1} parent=1 // pred_check
      _
    $region3: #{tpu_custom_call.1} parent=1 // pred_check_branch
      %9 = sbr.rel (0) target = $region5
    $region4: #{tpu_custom_call.1} parent=1 // pred_region
      // Predicated region
      $region6: #{tpu_custom_call.1} parent=4 // pred_check
        _
      $region7: #{tpu_custom_call.1} parent=4 // pred_check_branch
        %11 = sbr.rel (0) target = $region9
      $region8: #{tpu_custom_call.1} parent=4 // pred_region
        // Predicated region
        $region10: #{tpu_custom_call.1} parent=8 // pred_check
          _
        $region11: #{tpu_custom_call.1} parent=8 // pred_check_branch
          %13 = sbr.rel (0) target = $region13
        $region12: #{tpu_custom_call.1} parent=8 // pred_region
          // Predicated region
          $region25: #{tpu_custom_call.1} parent=12 // pred_check
            _
          $region26: #{tpu_custom_call.1} parent=12 // pred_check_branch
            %30 = sbr.rel (0) target = $region28
          $region27: #{tpu_custom_call.1} parent=12 // pred_region
            loop: start=0, step=1, limit=1
            $region29: #{tpu_custom_call.1} parent=27 // loop_pre_header
              _
            $region30: #{tpu_custom_call.1} parent=27 // loop_header
              %s32 = sphi 0, %s36
              %p33 = scmp.ge.s32.totalorder %s32, 1
              %s37 = sphi %s0, %s0
              %s38 = sphi [#allocation2], [#allocation2]
            $region31: #{tpu_custom_call.1} parent=27 // loop_header_branch
              %35 = sbr.rel (%p33) target = $region35
            $region32: #{tpu_custom_call.1} parent=27 // loop_body
              %v39 = vld [vmem:[%s37] sm:$0xff]
              %40 = vst [vmem:[%s38] sm:$0xff] %v39
              %v41 = vld [vmem:[%s37 + $0x8] sm:$0xff]
              %42 = vst [vmem:[%s38 + $0x20] sm:$0xff] %v41
            $region33: #{tpu_custom_call.1} parent=27 // loop_footer
              %s36 = sadd.s32 1, %s32
            $region34: #{tpu_custom_call.1} parent=27 // loop_footer_branch
              %31 = sbr.rel target = $region30
            $region35: #{tpu_custom_call.1} parent=27 // loop_exit
              _
          $region28: #{tpu_custom_call.1} parent=12 // pred_fallthru
            _
          // Predicated region
          $region36: #{tpu_custom_call.1} parent=12 // pred_check
            _
          $region37: #{tpu_custom_call.1} parent=12 // pred_check_branch
            %44 = sbr.rel target = $region39
          $region38: #{tpu_custom_call.1} parent=12 // pred_region
            _
          $region39: #{tpu_custom_call.1} parent=12 // pred_fallthru
            _
        $region13: #{tpu_custom_call.1} parent=8 // pred_fallthru
          _
        // Predicated region
        $region14: #{tpu_custom_call.1} parent=8 // pred_check
          _
        $region15: #{tpu_custom_call.1} parent=8 // pred_check_branch
          %15 = sbr.rel target = $region17
        $region16: #{tpu_custom_call.1} parent=8 // pred_region
          loop: start=0, step=1, limit=1
          $region18: #{tpu_custom_call.1} parent=16 // loop_pre_header
            _
          $region19: #{tpu_custom_call.1} parent=16 // loop_header
            %s18 = sphi 0, %s22
            %p19 = scmp.ge.s32.totalorder %s18, 1
            %s23 = sphi %s0, %s0
            %s24 = sphi [#allocation2], [#allocation2]
          $region20: #{tpu_custom_call.1} parent=16 // loop_header_branch
            %21 = sbr.rel (%p19) target = $region24
          $region21: #{tpu_custom_call.1} parent=16 // loop_body
            %v25 = vld [vmem:[%s23] sm:$0xff]
            %26 = vst [vmem:[%s24] sm:$0xff] %v25
            %v27 = vld [vmem:[%s23 + $0x8] sm:$0xff]
            %28 = vst [vmem:[%s24 + $0x20] sm:$0xff] %v27
          $region22: #{tpu_custom_call.1} parent=16 // loop_footer
            %s22 = sadd.s32 1, %s18
          $region23: #{tpu_custom_call.1} parent=16 // loop_footer_branch
            %17 = sbr.rel target = $region19
          $region24: #{tpu_custom_call.1} parent=16 // loop_exit
            _
        $region17: #{tpu_custom_call.1} parent=8 // pred_fallthru
          _
      $region9: #{tpu_custom_call.1} parent=4 // pred_fallthru
        _
      %45 = vnop
    $region5: #{tpu_custom_call.1} parent=1 // pred_fallthru
      _
    // Predicated region
    $region40: #{tpu_custom_call.1} parent=1 // pred_check
      _
    $region41: #{tpu_custom_call.1} parent=1 // pred_check_branch
      %47 = sbr.rel (0) target = $region43
    $region42: #{tpu_custom_call.1} parent=1 // pred_region
      _
    $region43: #{tpu_custom_call.1} parent=1 // pred_fallthru
      _
    // Predicated region
    $region44: #{tpu_custom_call.1} parent=1 // pred_check
      _
    $region45: #{tpu_custom_call.1} parent=1 // pred_check_branch
      %49 = sbr.rel (0) target = $region47
    $region46: #{tpu_custom_call.1} parent=1 // pred_region
      _
    $region47: #{tpu_custom_call.1} parent=1 // pred_fallthru
      _
    %v50 = vlaneseq
    %v51 = vand.u32 %v50, 127
    %v52 = vadd.s32 %v51, 128
    %v53 = vadd.s32 %v51, 256
    %v54 = vadd.s32 %v51, 384
    %v55 = vlaneseq
    %v56 = vshrl.u32 %v55, 7
    %v57 = vadd.s32 %v56, 8
    %s58 = smul.u32 0, 512
    %s59 = ssub.s32 8, %s58
    %v60 = vld [vmem:[#allocation2] sm:$0xff]
    %v61 = vld [vmem:[#allocation2 + $0x8] sm:$0xff]
    %v62 = vld [vmem:[#allocation2 + $0x10] sm:$0xff]
    %v63 = vld [vmem:[#allocation2 + $0x18] sm:$0xff]
    %v64 = vld [vmem:[#allocation2 + $0x20] sm:$0x3]
    %v65 = vld [vmem:[#allocation2 + $0x28] sm:$0x3]
    %v66 = vld [vmem:[#allocation2 + $0x30] sm:$0x3]
    %v67 = vld [vmem:[#allocation2 + $0x38] sm:$0x3]
    %v68 = vld [vmem:[%s1] sm:$0xf]
    %s69 = ssub.s32 %s59, 0
    %v70 = vstv %s69
    %vm71 = vcmp.lt.s32.totalorder %v51, %v70
    %vm72 = vcmp.lt.s32.totalorder %v52, %v70
    %vm73 = vcmp.lt.s32.totalorder %v53, %v70
    %vm74 = vcmp.lt.s32.totalorder %v54, %v70
    %v75 = vsel %vm71, 1, 0
    %v76 = vsel %vm72, 1, 0
    %v77 = vsel %vm73, 1, 0
    %v78 = vsel %vm74, 1, 0
    %vm79 = vcmp.eq.s32.totalorder %v75, 1
    %vm80 = vcmp.eq.s32.totalorder %v76, 1
    %vm81 = vcmp.eq.s32.totalorder %v77, 1
    %vm82 = vcmp.eq.s32.totalorder %v78, 1
    %v83 = vsel %vm79, %v60, 0.0
    %v84 = vsel %vm80, %v61, 0.0
    %v85 = vsel %vm81, %v62, 0.0
    %v86 = vsel %vm82, %v63, 0.0
    %v87 = vsel %vm79, %v64, 0.0
    %v88 = vsel %vm80, %v65, 0.0
    %v89 = vsel %vm81, %v66, 0.0
    %v90 = vsel %vm82, %v67, 0.0
    %v91 = vlaneseq
    %v92 = vshrl.u32 %v91, 7
    %v93 = vsub.s32 0, %v92
    %v94 = vrot.slane %v68, %v93
    %v95 = vlaneseq
    %v96 = vshrl.u32 %v95, 7
    %v97 = vsub.s32 1, %v96
    %v98 = vrot.slane %v68, %v97
    %v99 = vlaneseq
    %v100 = vshrl.u32 %v99, 7
    %v101 = vsub.s32 2, %v100
    %v102 = vrot.slane %v68, %v101
    %v103 = vlaneseq
    %v104 = vshrl.u32 %v103, 7
    %v105 = vsub.s32 3, %v104
    %v106 = vrot.slane %v68, %v105
    %vm107 = vcmp.eq.s32.totalorder %v56, %v94
    %vm108 = vcmp.eq.s32.totalorder %v56, %v98
    %vm109 = vcmp.eq.s32.totalorder %v56, %v102
    %vm110 = vcmp.eq.s32.totalorder %v56, %v106
    %vm111 = vcmp.eq.s32.totalorder %v57, %v94
    %vm112 = vcmp.eq.s32.totalorder %v57, %v98
    %vm113 = vcmp.eq.s32.totalorder %v57, %v102
    %vm114 = vcmp.eq.s32.totalorder %v57, %v106
    %vm115 = vcmask 1041408
    %v116 = vsel %vm115, %v87, -inf
    %v117 = vmax.f32 %v83, %v116
    %v118 = vrot.slane %v117, 4
    %v119 = vmax.f32 %v117, %v118
    %v120 = vrot.slane %v119, 2
    %v121 = vmax.f32 %v119, %v120
    %v122 = vrot.slane %v121, 1
    %v123 = vmax.f32 %v121, %v122
    %v124 = vsel %vm115, %v88, -inf
    %v125 = vmax.f32 %v84, %v124
    %v126 = vrot.slane %v125, 4
    %v127 = vmax.f32 %v125, %v126
    %v128 = vrot.slane %v127, 2
    %v129 = vmax.f32 %v127, %v128
    %v130 = vrot.slane %v129, 1
    %v131 = vmax.f32 %v129, %v130
    %v132 = vsel %vm115, %v89, -inf
    %v133 = vmax.f32 %v85, %v132
    %v134 = vrot.slane %v133, 4
    %v135 = vmax.f32 %v133, %v134
    %v136 = vrot.slane %v135, 2
    %v137 = vmax.f32 %v135, %v136
    %v138 = vrot.slane %v137, 1
    %v139 = vmax.f32 %v137, %v138
    %v140 = vsel %vm115, %v90, -inf
    %v141 = vmax.f32 %v86, %v140
    %v142 = vrot.slane %v141, 4
    %v143 = vmax.f32 %v141, %v142
    %v144 = vrot.slane %v143, 2
    %v145 = vmax.f32 %v143, %v144
    %v146 = vrot.slane %v145, 1
    %v147 = vmax.f32 %v145, %v146
    %v148 = vsub.f32 %v83, %v123
    %v149 = vsub.f32 %v84, %v131
    %v150 = vsub.f32 %v85, %v139
    %v151 = vsub.f32 %v86, %v147
    %v152 = vsub.f32 %v87, %v123
    %v153 = vsub.f32 %v88, %v131
    %v154 = vsub.f32 %v89, %v139
    %v155 = vsub.f32 %v90, %v147
    %v156 = vmul.f32 %v148, 1.442695
    %v157 = vpow.pop %v156
    %v158 = vmul.f32 %v149, 1.442695
    %v159 = vpow.pop %v158
    %v160 = vmul.f32 %v150, 1.442695
    %v161 = vpow.pop %v160
    %v162 = vmul.f32 %v151, 1.442695
    %v163 = vpow.pop %v162
    %v164 = vmul.f32 %v152, 1.442695
    %v165 = vpow.pop %v164
    %v166 = vmul.f32 %v153, 1.442695
    %v167 = vpow.pop %v166
    %v168 = vmul.f32 %v154, 1.442695
    %v169 = vpow.pop %v168
    %v170 = vmul.f32 %v155, 1.442695
    %v171 = vpow.pop %v170
    %v172 = vsel %vm115, %v165, 0.0
    %v173 = vadd.f32 %v157, %v172
    %v174 = vrot.slane %v173, 4
    %v175 = vadd.f32 %v173, %v174
    %v176 = vrot.slane %v175, 2
    %v177 = vadd.f32 %v175, %v176
    %v178 = vrot.slane %v177, 1
    %v179 = vadd.f32 %v177, %v178
    %v180 = vsel %vm115, %v167, 0.0
    %v181 = vadd.f32 %v159, %v180
    %v182 = vrot.slane %v181, 4
    %v183 = vadd.f32 %v181, %v182
    %v184 = vrot.slane %v183, 2
    %v185 = vadd.f32 %v183, %v184
    %v186 = vrot.slane %v185, 1
    %v187 = vadd.f32 %v185, %v186
    %v188 = vsel %vm115, %v169, 0.0
    %v189 = vadd.f32 %v161, %v188
    %v190 = vrot.slane %v189, 4
    %v191 = vadd.f32 %v189, %v190
    %v192 = vrot.slane %v191, 2
    %v193 = vadd.f32 %v191, %v192
    %v194 = vrot.slane %v193, 1
    %v195 = vadd.f32 %v193, %v194
    %v196 = vsel %vm115, %v171, 0.0
    %v197 = vadd.f32 %v163, %v196
    %v198 = vrot.slane %v197, 4
    %v199 = vadd.f32 %v197, %v198
    %v200 = vrot.slane %v199, 2
    %v201 = vadd.f32 %v199, %v200
    %v202 = vrot.slane %v201, 1
    %v203 = vadd.f32 %v201, %v202
    %v204 = vlog2.pop %v179
    %v205 = vmul.f32 %v204, 0.6931472
    %v206 = vlog2.pop %v187
    %v207 = vmul.f32 %v206, 0.6931472
    %v208 = vlog2.pop %v195
    %v209 = vmul.f32 %v208, 0.6931472
    %v210 = vlog2.pop %v203
    %v211 = vmul.f32 %v210, 0.6931472
    %v212 = vsel %vm115, %v152, 0.0
    %v213 = vadd.f32 %v148, %v212
    %v214 = vrot.slane %v213, 4
    %v215 = vadd.f32 %v213, %v214
    %v216 = vrot.slane %v215, 2
    %v217 = vadd.f32 %v215, %v216
    %v218 = vrot.slane %v217, 1
    %v219 = vadd.f32 %v217, %v218
    %v220 = vsel %vm115, %v153, 0.0
    %v221 = vadd.f32 %v149, %v220
    %v222 = vrot.slane %v221, 4
    %v223 = vadd.f32 %v221, %v222
    %v224 = vrot.slane %v223, 2
    %v225 = vadd.f32 %v223, %v224
    %v226 = vrot.slane %v225, 1
    %v227 = vadd.f32 %v225, %v226
    %v228 = vsel %vm115, %v154, 0.0
    %v229 = vadd.f32 %v150, %v228
    %v230 = vrot.slane %v229, 4
    %v231 = vadd.f32 %v229, %v230
    %v232 = vrot.slane %v231, 2
    %v233 = vadd.f32 %v231, %v232
    %v234 = vrot.slane %v233, 1
    %v235 = vadd.f32 %v233, %v234
    %v236 = vsel %vm115, %v155, 0.0
    %v237 = vadd.f32 %v151, %v236
    %v238 = vrot.slane %v237, 4
    %v239 = vadd.f32 %v237, %v238
    %v240 = vrot.slane %v239, 2
    %v241 = vadd.f32 %v239, %v240
    %v242 = vrot.slane %v241, 1
    %v243 = vadd.f32 %v241, %v242
    %v244 = vsel %vm107, %v148, 0.0
    %v245 = vsel %vm108, %v149, 0.0
    %v246 = vsel %vm109, %v150, 0.0
    %v247 = vsel %vm110, %v151, 0.0
    %v248 = vsel %vm111, %v152, 0.0
    %v249 = vsel %vm112, %v153, 0.0
    %v250 = vsel %vm113, %v154, 0.0
    %v251 = vsel %vm114, %v155, 0.0
    %v252 = vsel %vm115, %v248, 0.0
    %v253 = vadd.f32 %v244, %v252
    %v254 = vrot.slane %v253, 4
    %v255 = vadd.f32 %v253, %v254
    %v256 = vrot.slane %v255, 2
    %v257 = vadd.f32 %v255, %v256
    %v258 = vrot.slane %v257, 1
    %v259 = vadd.f32 %v257, %v258
    %v260 = vsel %vm115, %v249, 0.0
    %v261 = vadd.f32 %v245, %v260
    %v262 = vrot.slane %v261, 4
    %v263 = vadd.f32 %v261, %v262
    %v264 = vrot.slane %v263, 2
    %v265 = vadd.f32 %v263, %v264
    %v266 = vrot.slane %v265, 1
    %v267 = vadd.f32 %v265, %v266
    %v268 = vsel %vm115, %v250, 0.0
    %v269 = vadd.f32 %v246, %v268
    %v270 = vrot.slane %v269, 4
    %v271 = vadd.f32 %v269, %v270
    %v272 = vrot.slane %v271, 2
    %v273 = vadd.f32 %v271, %v272
    %v274 = vrot.slane %v273, 1
    %v275 = vadd.f32 %v273, %v274
    %v276 = vsel %vm115, %v251, 0.0
    %v277 = vadd.f32 %v247, %v276
    %v278 = vrot.slane %v277, 4
    %v279 = vadd.f32 %v277, %v278
    %v280 = vrot.slane %v279, 2
    %v281 = vadd.f32 %v279, %v280
    %v282 = vrot.slane %v281, 1
    %v283 = vadd.f32 %v281, %v282
    %v284 = vsel %vm107, %v157, 0.0
    %v285 = vsel %vm108, %v159, 0.0
    %v286 = vsel %vm109, %v161, 0.0
    %v287 = vsel %vm110, %v163, 0.0
    %v288 = vsel %vm111, %v165, 0.0
    %v289 = vsel %vm112, %v167, 0.0
    %v290 = vsel %vm113, %v169, 0.0
    %v291 = vsel %vm114, %v171, 0.0
    %v292 = vsel %vm115, %v288, 0.0
    %v293 = vadd.f32 %v284, %v292
    %v294 = vrot.slane %v293, 4
    %v295 = vadd.f32 %v293, %v294
    %v296 = vrot.slane %v295, 2
    %v297 = vadd.f32 %v295, %v296
    %v298 = vrot.slane %v297, 1
    %v299 = vadd.f32 %v297, %v298
    %v300 = vsel %vm115, %v289, 0.0
    %v301 = vadd.f32 %v285, %v300
    %v302 = vrot.slane %v301, 4
    %v303 = vadd.f32 %v301, %v302
    %v304 = vrot.slane %v303, 2
    %v305 = vadd.f32 %v303, %v304
    %v306 = vrot.slane %v305, 1
    %v307 = vadd.f32 %v305, %v306
    %v308 = vsel %vm115, %v290, 0.0
    %v309 = vadd.f32 %v286, %v308
    %v310 = vrot.slane %v309, 4
    %v311 = vadd.f32 %v309, %v310
    %v312 = vrot.slane %v311, 2
    %v313 = vadd.f32 %v311, %v312
    %v314 = vrot.slane %v313, 1
    %v315 = vadd.f32 %v313, %v314
    %v316 = vsel %vm115, %v291, 0.0
    %v317 = vadd.f32 %v287, %v316
    %v318 = vrot.slane %v317, 4
    %v319 = vadd.f32 %v317, %v318
    %v320 = vrot.slane %v319, 2
    %v321 = vadd.f32 %v319, %v320
    %v322 = vrot.slane %v321, 1
    %v323 = vadd.f32 %v321, %v322
    %v324 = vsub.f32 %v205, %v259
    %v325 = vsub.f32 %v207, %v267
    %v326 = vsub.f32 %v209, %v275
    %v327 = vsub.f32 %v211, %v283
    %v328 = vmul.f32 %v205, 10.0
    %v329 = vmul.f32 %v207, 10.0
    %v330 = vmul.f32 %v209, 10.0
    %v331 = vmul.f32 %v211, 10.0
    %v332 = vsub.f32 %v328, %v219
    %v333 = vsub.f32 %v329, %v227
    %v334 = vsub.f32 %v330, %v235
    %v335 = vsub.f32 %v331, %v243
    %v336 = vrcp.pop %v332
    %v337 = vrcp.pop %v333
    %v338 = vrcp.pop %v334
    %v339 = vrcp.pop %v335
    %v340 = vmul.f32 %v324, %v336
    %v341 = vmul.f32 %v325, %v337
    %v342 = vmul.f32 %v326, %v338
    %v343 = vmul.f32 %v327, %v339
    %v344 = vrcp.pop %v179
    %v345 = vrcp.pop %v187
    %v346 = vrcp.pop %v195
    %v347 = vrcp.pop %v203
    %v348 = vmul.f32 %v299, %v344
    %v349 = vmul.f32 %v307, %v345
    %v350 = vmul.f32 %v315, %v346
    %v351 = vmul.f32 %v323, %v347
    %v352 = vsub.f32 6.0, %v348
    %v353 = vsub.f32 6.0, %v349
    %v354 = vsub.f32 6.0, %v350
    %v355 = vsub.f32 6.0, %v351
    %v356 = vrsqrt.pop %v352
    %v357 = vmul.f32 %v352, %v356
    %vm358 = vcmp.eq.f32.partialorder %v352, inf
    %v359 = vsel %vm358, %v352, %v357
    %vm360 = vcmp.eq.f32.partialorder %v352, 0.0
    %v361 = vand.u32 %v352, 2147483648
    %v362 = vsel %vm360, %v361, %v359
    %v363 = vrsqrt.pop %v353
    %v364 = vmul.f32 %v353, %v363
    %vm365 = vcmp.eq.f32.partialorder %v353, inf
    %v366 = vsel %vm365, %v353, %v364
    %vm367 = vcmp.eq.f32.partialorder %v353, 0.0
    %v368 = vand.u32 %v353, 2147483648
    %v369 = vsel %vm367, %v368, %v366
    %v370 = vrsqrt.pop %v354
    %v371 = vmul.f32 %v354, %v370
    %vm372 = vcmp.eq.f32.partialorder %v354, inf
    %v373 = vsel %vm372, %v354, %v371
    %vm374 = vcmp.eq.f32.partialorder %v354, 0.0
    %v375 = vand.u32 %v354, 2147483648
    %v376 = vsel %vm374, %v375, %v373
    %v377 = vrsqrt.pop %v355
    %v378 = vmul.f32 %v355, %v377
    %vm379 = vcmp.eq.f32.partialorder %v355, inf
    %v380 = vsel %vm379, %v355, %v378
    %vm381 = vcmp.eq.f32.partialorder %v355, 0.0
    %v382 = vand.u32 %v355, 2147483648
    %v383 = vsel %vm381, %v382, %v380
    %v384 = vmul.f32 %v352, %v362
    %v385 = vmul.f32 %v353, %v369
    %v386 = vmul.f32 %v354, %v376
    %v387 = vmul.f32 %v355, %v383
    %v388 = vsub.f32 %v384, 11.18034
    %v389 = vsub.f32 %v385, 11.18034
    %v390 = vsub.f32 %v386, 11.18034
    %v391 = vsub.f32 %v387, 11.18034
    %v392 = vmul.f32 %v388, 0.6666667
    %v393 = vmul.f32 %v389, 0.6666667
    %v394 = vmul.f32 %v390, 0.6666667
    %v395 = vmul.f32 %v391, 0.6666667
    %v396 = vcvt.s32.f32 %v75
    %v397 = vcvt.s32.f32 %v76
    %v398 = vcvt.s32.f32 %v77
    %v399 = vcvt.s32.f32 %v78
    %v400 = vmul.f32 %v340, %v396
    %v401 = vmul.f32 %v341, %v397
    %v402 = vmul.f32 %v342, %v398
    %v403 = vmul.f32 %v343, %v399
    %v404 = vmul.f32 %v392, %v396
    %v405 = vmul.f32 %v393, %v397
    %v406 = vmul.f32 %v394, %v398
    %v407 = vmul.f32 %v395, %v399
    %vm408 = vcmask 1040384
    %v409 = vsel %vm408, %v400, 0.0
    %v410 = vsel %vm408, %v401, 0.0
    %v411 = vadd.f32 %v409, %v410
    %v412 = vsel %vm408, %v402, 0.0
    %v413 = vadd.f32 %v411, %v412
    %v414 = vsel %vm408, %v403, 0.0
    %v415 = vadd.f32 %v413, %v414
    %416 = vadd.xlane.f32.xlu0 %v415
    %v417 = vpop.xlane.xlu0 %416
    %v418 = vrot.slane %v417, 4
    %v419 = vadd.f32 %v417, %v418
    %v420 = vrot.slane %v419, 2
    %v421 = vadd.f32 %v419, %v420
    %v422 = vrot.slane %v421, 1
    %v423 = vadd.f32 %v421, %v422
    %s424 = vtos %v423
    %s425 = sadd.f32 %s424, 0.0
    %v426 = vsel %vm408, %v404, 0.0
    %v427 = vsel %vm408, %v405, 0.0
    %v428 = vadd.f32 %v426, %v427
    %v429 = vsel %vm408, %v406, 0.0
    %v430 = vadd.f32 %v428, %v429
    %v431 = vsel %vm408, %v407, 0.0
    %v432 = vadd.f32 %v430, %v431
    %433 = vadd.xlane.f32.xlu0 %v432
    %v434 = vpop.xlane.xlu0 %433
    %v435 = vrot.slane %v434, 4
    %v436 = vadd.f32 %v434, %v435
    %v437 = vrot.slane %v436, 2
    %v438 = vadd.f32 %v436, %v437
    %v439 = vrot.slane %v438, 1
    %v440 = vadd.f32 %v438, %v439
    %s441 = vtos %v440
    %s442 = sadd.f32 %s441, 0.0
    %v443 = vstv %s425
    %v444 = vstv %s442
    %v445 = vsel %vm408, %v443, %v444
    %446 = vst [vmem:[#allocation3] sm:$0x3] %v445
    // Predicated region
    $region48: #{tpu_custom_call.1} parent=1 // pred_check
      _
    $region49: #{tpu_custom_call.1} parent=1 // pred_check_branch
      %448 = sbr.rel (0) target = $region51
    $region50: #{tpu_custom_call.1} parent=1 // pred_region
      %s450 = ssub.s32 32, 32
      %451 = vsyncadd [#allocation4], %s450
      %s453 = sshll.u32 [#allocation3], 4
      %s454 = int_to_ptr.vmem [resolvable:$true] %s453
      %456 = dma.vmem_to_hbm [thread:$0]  %s454, 32, %s2, [#allocation4]
    $region51: #{tpu_custom_call.1} parent=1 // pred_fallthru
      _
    // Predicated region
    $region52: #{tpu_custom_call.1} parent=1 // pred_check
      _
    $region53: #{tpu_custom_call.1} parent=1 // pred_check_branch
      %458 = sbr.rel (0) target = $region55
    $region54: #{tpu_custom_call.1} parent=1 // pred_region
      %459 = dma.done [#allocation4], 32
    $region55: #{tpu_custom_call.1} parent=1 // pred_fallthru
      _
    %460 = vsyncpa [#allocation4], 1

</llo_original>
